<compile_context>
chip_gen: v6e
topology: v6e:2x2x1
jax: 0.10.0
libtpu: 0.0.40
codegen_flags: <defaults>
</compile_context>

<pallas_src>
import jax
import jax.numpy as jnp
from jax.experimental import pallas as pl
from jax.experimental.pallas import tpu as pltpu

EPS = 1e-5


# ----------------------------------------------------------------------------
# Kernels
# ----------------------------------------------------------------------------
def _layernorm_kernel(x_ref, w_ref, b_ref, o_ref):
    # x_ref: (tile_rows, D), w_ref/b_ref: (1, D)
    x = x_ref[...].astype(jnp.float32)
    mean = jnp.mean(x, axis=-1, keepdims=True)
    xc = x - mean
    var = jnp.mean(xc * xc, axis=-1, keepdims=True)   # biased var (F.layer_norm)
    inv = jax.lax.rsqrt(var + EPS)                    # EUP slot, essentially free
    y = xc * inv * w_ref[...].astype(jnp.float32) + b_ref[...].astype(jnp.float32)
    o_ref[...] = y.astype(o_ref.dtype)


def _layernorm_packed_kernel(x_ref, w_ref, b_ref, p_ref, o_ref):
    # Lane-dense path for D < 128 with G = 128 // D packed rows per lane-row.
    #   x_ref: (tile_rows, 128) -- G original rows of length D, concatenated.
    #   p_ref: (128, 128) block-diagonal matrix with 1/D inside each DxD block,
    #          so  x @ P  broadcasts every segment's mean back across its lanes
    #          (segmented reduction on the otherwise idle MXU, no reshapes).
    #   w_ref/b_ref: (1, 128) -- weight/bias tiled G times.
    x = x_ref[...].astype(jnp.float32)
    p = p_ref[...]
    mean = jnp.dot(x, p, precision=jax.lax.Precision.HIGHEST,
                   preferred_element_type=jnp.float32)
    xc = x - mean
    var = jnp.dot(xc * xc, p, precision=jax.lax.Precision.HIGHEST,
                  preferred_element_type=jnp.float32)
    inv = jax.lax.rsqrt(var + EPS)
    y = xc * inv * w_ref[...].astype(jnp.float32) + b_ref[...].astype(jnp.float32)
    o_ref[...] = y.astype(o_ref.dtype)


# ----------------------------------------------------------------------------
# Tiling helpers
# ----------------------------------------------------------------------------
def _round_up(x, m):
    return -(-x // m) * m


def _round_down(x, m):
    return (x // m) * m


def _cdiv(a, b):
    return -(-a // b)


def _vmem_capacity_bytes():
    try:
        cap = getattr(pltpu.get_tpu_info(), "vmem_capacity_bytes", None)
        if cap:
            return int(cap)
    except Exception:
        pass
    # Conservative fallback: assume the smallest generation (v7x: 64 MiB / TC).
    return 64 * 1024 * 1024


def _sublane_multiple(itemsize):
    # f32 -> 8, bf16 -> 16, int8/fp8 -> 32 (sub-32-bit dtypes pack along sublanes)
    return max(8, 32 // max(1, itemsize))


def _choose_tile_rows(n_rows, row_elems, itemsize, vmem_cap):
    """Rows per grid step, sized by BYTES, accounting for f32 intermediates."""
    sub = _sublane_multiple(itemsize)
    rows_up = _round_up(n_rows, sub)

    # Live VMEM per tile row:
    #   2x input tile + 2x output tile (Pallas double-buffers both): 4 * E * isz
    #   ~3 full-tile f32 temporaries from the in-kernel upcast (x, xc, y): 3*E*4
    per_row = 4 * row_elems * itemsize + 3 * row_elems * 4
    budget = vmem_cap // 2                    # leave half of VMEM as headroom
    max_rows = max(sub, _round_down(budget // per_row, sub))

    # Target ~8 MiB of *input* per tile: amortizes the ~0.35 us per-step cost
    # (multi-MiB tiles reach 85%+ of HBM roofline), diminishing returns past it.
    target = max(sub, _round_down((8 << 20) // (row_elems * itemsize), sub))

    tile = min(max_rows, target, rows_up)

    # Prefer an even step count >= 4 when the input is big enough: the
    # "parallel" grid axis is sharded across v7x's 2 TensorCores, so >= 2
    # steps/core keeps per-core double-buffering alive and an even total avoids
    # a one-tile tail imbalance.  Neutral on v5e/v6e (1 TC).
    if rows_up >= 4 * sub:
        steps = _cdiv(n_rows, tile)
        if steps < 4:
            steps = 4
        elif steps % 2:
            steps += 1
        tile = min(tile, max(sub, _round_up(_cdiv(rows_up, steps), sub)))
    return tile


# ----------------------------------------------------------------------------
# Wrapper
# ----------------------------------------------------------------------------
@jax.jit
def layer_norm(x, weight, bias=None):
    """LayerNorm over the last axis of x, matching torch.nn.functional.layer_norm."""
    orig_shape = x.shape
    D = orig_shape[-1]
    if bias is None:  # LayerNorm(..., bias=False)
        bias = jnp.zeros((D,), dtype=weight.dtype)

    x2 = x.reshape(-1, D)
    N = x2.shape[0]
    itemsize = jnp.dtype(x.dtype).itemsize
    vmem_cap = _vmem_capacity_bytes()

    # Lane-dense packing for narrow features (D < 128 and D | 128).
    G = 128 // D if (0 < D < 128 and 128 % D == 0) else 1
    packed = (G > 1) and (N % G == 0)

    if packed:
        row_elems = G * D                              # == 128
        xk = x2.reshape(N // G, row_elems)             # contiguous, free under jit
        wk = jnp.tile(weight.reshape(1, D), (1, G))
        bk = jnp.tile(bias.reshape(1, D), (1, G))
        seg = jnp.arange(row_elems) // D
        pmat = (seg[:, None] == seg[None, :]).astype(jnp.float32) / D
        kernel = _layernorm_packed_kernel
        extra_inputs = (pmat,)
        extra_specs = [pl.BlockSpec((row_elems, row_elems), lambda i: (0, 0))]
        extra_bytes = 2 * row_elems * row_elems * 4
    else:
        row_elems = D
        xk = x2
        wk = weight.reshape(1, D)
        bk = bias.reshape(1, D)
        kernel = _layernorm_kernel
        extra_inputs = ()
        extra_specs = []
        extra_bytes = 0

    n_rows = xk.shape[0]
    tile_rows = _choose_tile_rows(n_rows, row_elems, itemsize, vmem_cap)
    grid_steps = _cdiv(n_rows, tile_rows)   # partial last block masked by Pallas

    # Scoped VMEM: double-buffered in/out tiles + f32 temps + weight/bias (+ P)
    # + slack, with headroom but capped below physical VMEM (v7x = 64 MiB/TC).
    per_row = 4 * row_elems * itemsize + 3 * row_elems * 4
    need = tile_rows * per_row + 4 * row_elems * 4 + extra_bytes + (1 << 20)
    vmem_limit = int(min(max(need * 3 // 2, 32 << 20), int(vmem_cap * 0.9)))
    vmem_limit = max(vmem_limit, need)

    out = pl.pallas_call(
        kernel,
        out_shape=jax.ShapeDtypeStruct((n_rows, row_elems), x.dtype),
        grid_spec=pltpu.PrefetchScalarGridSpec(
            num_scalar_prefetch=0,
            grid=(grid_steps,),
            in_specs=[
                pl.BlockSpec((tile_rows, row_elems), lambda i: (i, 0)),
                pl.BlockSpec((1, row_elems), lambda i: (0, 0)),
                pl.BlockSpec((1, row_elems), lambda i: (0, 0)),
            ] + extra_specs,
            out_specs=pl.BlockSpec((tile_rows, row_elems), lambda i: (i, 0)),
        ),
        compiler_params=pltpu.CompilerParams(
            dimension_semantics=("parallel",),
            vmem_limit_bytes=vmem_limit,
        ),
    )(xk, wk, bk, *extra_inputs)

    # Un-pack (pure contiguous reshape -> bitcast under jit, no HBM traffic).
    return out.reshape(orig_shape)


# ----------------------------------------------------------------------------
# Reference + test
# ----------------------------------------------------------------------------
def _reference(x, weight, bias):
    x32 = x.astype(jnp.float32)
    mean = jnp.mean(x32, axis=-1, keepdims=True)
    var = jnp.mean((x32 - mean) ** 2, axis=-1, keepdims=True)
    y = (x32 - mean) * jax.lax.rsqrt(var + EPS) * weight + bias
    return y.astype(x.dtype)


if __name__ == "__main__":
    key = jax.random.PRNGKey(0)
    B, T, D = 2, 8, 32  # small shapes consistent with the module's usage

    x = jax.random.normal(key, (B, T, D), dtype=jnp.float32)
    # Deterministic parameter init matching the module: weight=ones, bias=zeros.
    weight = jnp.ones((D,), dtype=jnp.float32)
    bias = jnp.zeros((D,), dtype=jnp.float32)

    # Packed (lane-dense) path: D=32 < 128, N=16 divisible by G=4.
    y = jax.block_until_ready(layer_norm(x, weight, bias))
    ref = _reference(x, weight, bias)
    assert y.shape == x.shape
    assert jnp.allclose(y, ref, atol=1e-5, rtol=1e-5), "mismatch (packed path)"

    # Plain path, ragged row count (N=15 not divisible by G): exercises the
    # pad-free partial-last-block handling with a non-trivial affine.
    k1, k2, k3 = jax.random.split(jax.random.PRNGKey(1), 3)
    x2 = jax.random.normal(k1, (3, 5, D), dtype=jnp.float32)
    w2 = jax.random.normal(k2, (D,), dtype=jnp.float32) * 0.1 + 1.0
    b2 = jax.random.normal(k3, (D,), dtype=jnp.float32) * 0.1
    y2 = jax.block_until_ready(layer_norm(x2, w2, b2))
    ref2 = _reference(x2, w2, b2)
    assert jnp.allclose(y2, ref2, atol=1e-5, rtol=1e-5), "mismatch (ragged/plain path)"

    # Plain lane-dense path (D a multiple of 128).
    D3 = 256
    x3 = jax.random.normal(jax.random.PRNGKey(2), (2, 8, D3), dtype=jnp.float32)
    w3 = jnp.ones((D3,), dtype=jnp.float32)
    b3 = jnp.zeros((D3,), dtype=jnp.float32)
    y3 = jax.block_until_ready(layer_norm(x3, w3, b3))
    ref3 = _reference(x3, w3, b3)
    assert jnp.allclose(y3, ref3, atol=1e-5, rtol=1e-5), "mismatch (D=256 path)"

    print("KERNEL_OK")
</pallas_src>

<mosaic_0001>
module attributes {stable_mosaic.version = 11 : i64} {
  func.func @_layernorm_packed_kernel(%arg0: i32, %arg1: memref<8x128xf32, #tpu.memory_space<vmem>>, %arg2: memref<1x128xf32, #tpu.memory_space<vmem>>, %arg3: memref<1x128xf32, #tpu.memory_space<vmem>>, %arg4: memref<128x128xf32, #tpu.memory_space<vmem>>, %arg5: memref<8x128xf32, #tpu.memory_space<vmem>>) attributes {dimension_semantics = [#tpu.dimension_semantics<parallel>], iteration_bounds = array<i64: 1>, scalar_prefetch = 0 : i64, scratch_operands = 0 : i64, tpu.core_type = #tpu.core_type<tc>, window_params = [{transform_indices = @transform_0, window_bounds = array<i64: 8, 128>}, {pipeline_mode = #tpu.pipeline_mode<synchronous>, transform_indices = @transform_1, window_bounds = array<i64: 1, 128>}, {pipeline_mode = #tpu.pipeline_mode<synchronous>, transform_indices = @transform_2, window_bounds = array<i64: 1, 128>}, {pipeline_mode = #tpu.pipeline_mode<synchronous>, transform_indices = @transform_3, window_bounds = array<i64: 128, 128>}, {transform_indices = @transform_4, window_bounds = array<i64: 8, 128>}]} {
    %c0 = arith.constant 0 : index
    %c0_0 = arith.constant 0 : index
    %0 = vector.load %arg1[%c0, %c0_0] : memref<8x128xf32, #tpu.memory_space<vmem>>, vector<8x128xf32>
    %c0_1 = arith.constant 0 : index
    %c0_2 = arith.constant 0 : index
    %1 = vector.load %arg4[%c0_1, %c0_2] : memref<128x128xf32, #tpu.memory_space<vmem>>, vector<128x128xf32>
    %cst = arith.constant dense<0.000000e+00> : vector<8x128xf32>
    %2 = tpu.matmul %0, %1, %cst {dimension_numbers = #tpu.dot_dimension_numbers<[1], [0], [0], [1], [0, 0, 1, 1], [], []>, precision = #tpu.contract_precision<fp32>} : vector<8x128xf32>, vector<128x128xf32>, vector<8x128xf32> -> vector<8x128xf32>
    %3 = arith.subf %0, %2 : vector<8x128xf32>
    %4 = arith.mulf %3, %3 : vector<8x128xf32>
    %cst_3 = arith.constant dense<0.000000e+00> : vector<8x128xf32>
    %5 = tpu.matmul %4, %1, %cst_3 {dimension_numbers = #tpu.dot_dimension_numbers<[1], [0], [0], [1], [0, 0, 1, 1], [], []>, precision = #tpu.contract_precision<fp32>} : vector<8x128xf32>, vector<128x128xf32>, vector<8x128xf32> -> vector<8x128xf32>
    %cst_4 = arith.constant 9.99999974E-6 : f32
    %6 = vector.broadcast %cst_4 : f32 to vector<8x128xf32>
    %7 = arith.addf %5, %6 : vector<8x128xf32>
    %8 = math.rsqrt %7 : vector<8x128xf32>
    %9 = arith.mulf %3, %8 : vector<8x128xf32>
    %c0_5 = arith.constant 0 : index
    %c0_6 = arith.constant 0 : index
    %10 = vector.load %arg2[%c0_5, %c0_6] : memref<1x128xf32, #tpu.memory_space<vmem>>, vector<1x128xf32>
    %11 = vector.broadcast %10 : vector<1x128xf32> to vector<8x128xf32>
    %12 = arith.mulf %9, %11 : vector<8x128xf32>
    %c0_7 = arith.constant 0 : index
    %c0_8 = arith.constant 0 : index
    %13 = vector.load %arg3[%c0_7, %c0_8] : memref<1x128xf32, #tpu.memory_space<vmem>>, vector<1x128xf32>
    %14 = vector.broadcast %13 : vector<1x128xf32> to vector<8x128xf32>
    %15 = arith.addf %12, %14 : vector<8x128xf32>
    %c0_9 = arith.constant 0 : index
    %c0_10 = arith.constant 0 : index
    %16 = vector.load %arg5[%c0_9, %c0_10] : memref<8x128xf32, #tpu.memory_space<vmem>>, vector<8x128xf32>
    tpu.vector_store %arg5[%c0_9, %c0_10], %15 {strides = array<i32>} : memref<8x128xf32, #tpu.memory_space<vmem>>, vector<8x128xf32>,
    return
  }
  func.func @transform_0(%arg0: i32) -> (i32, i32) {
    %c0_i32 = arith.constant 0 : i32
    %c0_i32_0 = arith.constant 0 : i32
    return %arg0, %c0_i32 : i32, i32
  }
  func.func @transform_1(%arg0: i32) -> (i32, i32) {
    %c0_i32 = arith.constant 0 : i32
    %c0_i32_0 = arith.constant 0 : i32
    %c0_i32_1 = arith.constant 0 : i32
    return %c0_i32, %c0_i32_0 : i32, i32
  }
  func.func @transform_2(%arg0: i32) -> (i32, i32) {
    %c0_i32 = arith.constant 0 : i32
    %c0_i32_0 = arith.constant 0 : i32
    %c0_i32_1 = arith.constant 0 : i32
    return %c0_i32, %c0_i32_0 : i32, i32
  }
  func.func @transform_3(%arg0: i32) -> (i32, i32) {
    %c0_i32 = arith.constant 0 : i32
    %c0_i32_0 = arith.constant 0 : i32
    %c0_i32_1 = arith.constant 0 : i32
    return %c0_i32, %c0_i32_0 : i32, i32
  }
  func.func @transform_4(%arg0: i32) -> (i32, i32) {
    %c0_i32 = arith.constant 0 : i32
    %c0_i32_0 = arith.constant 0 : i32
    return %arg0, %c0_i32 : i32, i32
  }
}

</mosaic_0001>

<llo_original>
// kernel: layer_norm.1
$region0: #{layer_norm.1}
  #allocation0 [shape = 'u32[]', space=smem, size = 0x4, offset = 0x4, fixed_abs, tag = 'smem constant byte address 0x4 - core index']
  #allocation1 [shape = 'u32[144,128]{1,0:T(1,128)}', space=vmem, size = 0x12000, scoped, tag = 'internal scratch']
  %s0 = inlined_call_operand.vmem [shape: f32[4,128], index: 0, kind: input, shape index: {}]
  %s1 = inlined_call_operand.vmem [shape: f32[1,128], index: 1, kind: input, shape index: {}]
  %s2 = inlined_call_operand.vmem [shape: f32[1,128], index: 2, kind: input, shape index: {}]
  %s3 = inlined_call_operand.vmem [shape: f32[128,128], index: 3, kind: input, shape index: {}]
  %s4 = inlined_call_operand.vmem [shape: f32[4,128], index: 4, kind: output, shape index: {}]
  %s5 = sld [smem:[#allocation0]]
  $region56: #{layer_norm.1} parent=0
    _
  %s7 = ssub.s32 1, %s5
  %s8 = scalar_select 0, %s7, %s5
  $region1: #{layer_norm.1} parent=0
    #allocation2 [shape = 'u8[4096]{0}', space=vmem, size = 0x1000, scoped, tag = 'output window, operand 0, single buffered']
    // Predicated region
    $region2: #{layer_norm.1} parent=1 // pred_check
      _
    $region3: #{layer_norm.1} parent=1 // pred_check_branch
      %10 = sbr.rel (0) target = $region5
    $region4: #{layer_norm.1} parent=1 // pred_region
      _
    $region5: #{layer_norm.1} parent=1 // pred_fallthru
      _
    // Predicated region
    $region6: #{layer_norm.1} parent=1 // pred_check
      _
    $region7: #{layer_norm.1} parent=1 // pred_check_branch
      %12 = sbr.rel (0) target = $region9
    $region8: #{layer_norm.1} parent=1 // pred_region
      _
    $region9: #{layer_norm.1} parent=1 // pred_fallthru
      _
    // Predicated region
    $region10: #{layer_norm.1} parent=1 // pred_check
      _
    $region11: #{layer_norm.1} parent=1 // pred_check_branch
      %14 = sbr.rel (0) target = $region13
    $region12: #{layer_norm.1} parent=1 // pred_region
      _
    $region13: #{layer_norm.1} parent=1 // pred_fallthru
      _
    // Predicated region
    $region14: #{layer_norm.1} parent=1 // pred_check
      _
    $region15: #{layer_norm.1} parent=1 // pred_check_branch
      %16 = sbr.rel (0) target = $region17
    $region16: #{layer_norm.1} parent=1 // pred_region
      _
    $region17: #{layer_norm.1} parent=1 // pred_fallthru
      _
    %v17 = vld [vmem:[%s0] sm:$0xff]
    %v18 = vld [vmem:[%s3] sm:$0xff]
    %v19 = vld [vmem:[%s3 + $0x8] sm:$0xff]
    %v20 = vld [vmem:[%s3 + $0x10] sm:$0xff]
    %v21 = vld [vmem:[%s3 + $0x18] sm:$0xff]
    %v22 = vld [vmem:[%s3 + $0x20] sm:$0xff]
    %v23 = vld [vmem:[%s3 + $0x28] sm:$0xff]
    %v24 = vld [vmem:[%s3 + $0x30] sm:$0xff]
    %v25 = vld [vmem:[%s3 + $0x38] sm:$0xff]
    %v26 = vld [vmem:[%s3 + $0x40] sm:$0xff]
    %v27 = vld [vmem:[%s3 + $0x48] sm:$0xff]
    %v28 = vld [vmem:[%s3 + $0x50] sm:$0xff]
    %v29 = vld [vmem:[%s3 + $0x58] sm:$0xff]
    %v30 = vld [vmem:[%s3 + $0x60] sm:$0xff]
    %v31 = vld [vmem:[%s3 + $0x68] sm:$0xff]
    %v32 = vld [vmem:[%s3 + $0x70] sm:$0xff]
    %v33 = vld [vmem:[%s3 + $0x78] sm:$0xff]
    %34 = vmatprep.subr.mxu0 0.0
    %v35 = vand.u32 %v33, 4294901760
    %36 = vmatpush1.msra.mxu0 %v35
    %37 = vmatprep.subr.mxu0 0.0
    %v38 = vand.u32 %v32, 4294901760
    %39 = vmatpush1.msra.mxu0 %v38
    %40 = vmatprep.subr.mxu0 0.0
    %v41 = vand.u32 %v31, 4294901760
    %42 = vmatpush1.msra.mxu0 %v41
    %43 = vmatprep.subr.mxu0 0.0
    %v44 = vand.u32 %v30, 4294901760
    %45 = vmatpush1.msra.mxu0 %v44
    %46 = vmatprep.subr.mxu0 0.0
    %v47 = vand.u32 %v29, 4294901760
    %48 = vmatpush1.msra.mxu0 %v47
    %49 = vmatprep.subr.mxu0 0.0
    %v50 = vand.u32 %v28, 4294901760
    %51 = vmatpush1.msra.mxu0 %v50
    %52 = vmatprep.subr.mxu0 0.0
    %v53 = vand.u32 %v27, 4294901760
    %54 = vmatpush1.msra.mxu0 %v53
    %55 = vmatprep.subr.mxu0 0.0
    %v56 = vand.u32 %v26, 4294901760
    %57 = vmatpush1.msra.mxu0 %v56
    %58 = vmatprep.subr.mxu0 0.0
    %v59 = vand.u32 %v25, 4294901760
    %60 = vmatpush1.msra.mxu0 %v59
    %61 = vmatprep.subr.mxu0 0.0
    %v62 = vand.u32 %v24, 4294901760
    %63 = vmatpush1.msra.mxu0 %v62
    %64 = vmatprep.subr.mxu0 0.0
    %v65 = vand.u32 %v23, 4294901760
    %66 = vmatpush1.msra.mxu0 %v65
    %67 = vmatprep.subr.mxu0 0.0
    %v68 = vand.u32 %v22, 4294901760
    %69 = vmatpush1.msra.mxu0 %v68
    %70 = vmatprep.subr.mxu0 0.0
    %v71 = vand.u32 %v21, 4294901760
    %72 = vmatpush1.msra.mxu0 %v71
    %73 = vmatprep.subr.mxu0 0.0
    %v74 = vand.u32 %v20, 4294901760
    %75 = vmatpush1.msra.mxu0 %v74
    %76 = vmatprep.subr.mxu0 0.0
    %v77 = vand.u32 %v19, 4294901760
    %78 = vmatpush1.msra.mxu0 %v77
    %79 = vmatprep.subr.mxu0 0.0
    %v80 = vand.u32 %v18, 4294901760
    %81 = vmatpush1.msra.mxu0 %v80
    %82 = vmatprep.subr.mxu0 0.0
    %83 = vmatpush2.msra.mxu0 0.0
    %84 = vmatprep.subr.mxu0 0.0
    %85 = vmatpush2.msra.mxu0 0.0
    %86 = vmatprep.subr.mxu0 0.0
    %87 = vmatpush2.msra.mxu0 0.0
    %88 = vmatprep.subr.mxu0 0.0
    %89 = vmatpush2.msra.mxu0 0.0
    %90 = vmatprep.subr.mxu0 0.0
    %91 = vmatpush2.msra.mxu0 0.0
    %92 = vmatprep.subr.mxu0 0.0
    %93 = vmatpush2.msra.mxu0 0.0
    %94 = vmatprep.subr.mxu0 0.0
    %95 = vmatpush2.msra.mxu0 0.0
    %96 = vmatprep.subr.mxu0 0.0
    %97 = vmatpush2.msra.mxu0 0.0
    %98 = vmatprep.subr.mxu0 0.0
    %99 = vmatpush2.msra.mxu0 0.0
    %100 = vmatprep.subr.mxu0 0.0
    %101 = vmatpush2.msra.mxu0 0.0
    %102 = vmatprep.subr.mxu0 0.0
    %103 = vmatpush2.msra.mxu0 0.0
    %104 = vmatprep.subr.mxu0 0.0
    %105 = vmatpush2.msra.mxu0 0.0
    %106 = vmatprep.subr.mxu0 0.0
    %107 = vmatpush2.msra.mxu0 0.0
    %108 = vmatprep.subr.mxu0 0.0
    %109 = vmatpush2.msra.mxu0 0.0
    %110 = vmatprep.subr.mxu0 0.0
    %111 = vmatpush2.msra.mxu0 0.0
    %112 = vmatprep.subr.mxu0 0.0
    %113 = vmatpush2.msra.mxu0 0.0
    %114 = vmatprep.mubr.f32.mxu0 0.0
    %v115 = vand.u32 %v17, 4294901760
    %v116 = vsub.f32 %v17, %v115
    %v117 = vand.u32 %v116, 4294901760
    %v118 = vsub.f32 %v116, %v117
    %v119 = vand.u32 %v118, 4294901760
    %120 = vmatmul.mubr.f32.gmra.mxu0 %v119
    %v121 = vpop.f32.mrf.mxu0
    %v122 = vadd.f32 0.0, %v121
    %v123 = vpop.f32.mrf.mxu0
    %124 = vdwg.mxu0
    %125 = vmatprep.subr.mxu0 0.0
    %v126 = vand.u32 %v33, 4294901760
    %v127 = vsub.f32 %v33, %v126
    %v128 = vand.u32 %v127, 4294901760
    %v129 = vsub.f32 %v127, %v128
    %v130 = vand.u32 %v129, 4294901760
    %131 = vmatpush1.msra.mxu0 %v130
    %132 = vmatprep.subr.mxu0 0.0
    %v133 = vand.u32 %v32, 4294901760
    %v134 = vsub.f32 %v32, %v133
    %v135 = vand.u32 %v134, 4294901760
    %v136 = vsub.f32 %v134, %v135
    %v137 = vand.u32 %v136, 4294901760
    %138 = vmatpush1.msra.mxu0 %v137
    %139 = vmatprep.subr.mxu0 0.0
    %v140 = vand.u32 %v31, 4294901760
    %v141 = vsub.f32 %v31, %v140
    %v142 = vand.u32 %v141, 4294901760
    %v143 = vsub.f32 %v141, %v142
    %v144 = vand.u32 %v143, 4294901760
    %145 = vmatpush1.msra.mxu0 %v144
    %146 = vmatprep.subr.mxu0 0.0
    %v147 = vand.u32 %v30, 4294901760
    %v148 = vsub.f32 %v30, %v147
    %v149 = vand.u32 %v148, 4294901760
    %v150 = vsub.f32 %v148, %v149
    %v151 = vand.u32 %v150, 4294901760
    %152 = vmatpush1.msra.mxu0 %v151
    %153 = vmatprep.subr.mxu0 0.0
    %v154 = vand.u32 %v29, 4294901760
    %v155 = vsub.f32 %v29, %v154
    %v156 = vand.u32 %v155, 4294901760
    %v157 = vsub.f32 %v155, %v156
    %v158 = vand.u32 %v157, 4294901760
    %159 = vmatpush1.msra.mxu0 %v158
    %160 = vmatprep.subr.mxu0 0.0
    %v161 = vand.u32 %v28, 4294901760
    %v162 = vsub.f32 %v28, %v161
    %v163 = vand.u32 %v162, 4294901760
    %v164 = vsub.f32 %v162, %v163
    %v165 = vand.u32 %v164, 4294901760
    %166 = vmatpush1.msra.mxu0 %v165
    %167 = vmatprep.subr.mxu0 0.0
    %v168 = vand.u32 %v27, 4294901760
    %v169 = vsub.f32 %v27, %v168
    %v170 = vand.u32 %v169, 4294901760
    %v171 = vsub.f32 %v169, %v170
    %v172 = vand.u32 %v171, 4294901760
    %173 = vmatpush1.msra.mxu0 %v172
    %174 = vmatprep.subr.mxu0 0.0
    %v175 = vand.u32 %v26, 4294901760
    %v176 = vsub.f32 %v26, %v175
    %v177 = vand.u32 %v176, 4294901760
    %v178 = vsub.f32 %v176, %v177
    %v179 = vand.u32 %v178, 4294901760
    %180 = vmatpush1.msra.mxu0 %v179
    %181 = vmatprep.subr.mxu0 0.0
    %v182 = vand.u32 %v25, 4294901760
    %v183 = vsub.f32 %v25, %v182
    %v184 = vand.u32 %v183, 4294901760
    %v185 = vsub.f32 %v183, %v184
    %v186 = vand.u32 %v185, 4294901760
    %187 = vmatpush1.msra.mxu0 %v186
    %188 = vmatprep.subr.mxu0 0.0
    %v189 = vand.u32 %v24, 4294901760
    %v190 = vsub.f32 %v24, %v189
    %v191 = vand.u32 %v190, 4294901760
    %v192 = vsub.f32 %v190, %v191
    %v193 = vand.u32 %v192, 4294901760
    %194 = vmatpush1.msra.mxu0 %v193
    %195 = vmatprep.subr.mxu0 0.0
    %v196 = vand.u32 %v23, 4294901760
    %v197 = vsub.f32 %v23, %v196
    %v198 = vand.u32 %v197, 4294901760
    %v199 = vsub.f32 %v197, %v198
    %v200 = vand.u32 %v199, 4294901760
    %201 = vmatpush1.msra.mxu0 %v200
    %202 = vmatprep.subr.mxu0 0.0
    %v203 = vand.u32 %v22, 4294901760
    %v204 = vsub.f32 %v22, %v203
    %v205 = vand.u32 %v204, 4294901760
    %v206 = vsub.f32 %v204, %v205
    %v207 = vand.u32 %v206, 4294901760
    %208 = vmatpush1.msra.mxu0 %v207
    %209 = vmatprep.subr.mxu0 0.0
    %v210 = vand.u32 %v21, 4294901760
    %v211 = vsub.f32 %v21, %v210
    %v212 = vand.u32 %v211, 4294901760
    %v213 = vsub.f32 %v211, %v212
    %v214 = vand.u32 %v213, 4294901760
    %215 = vmatpush1.msra.mxu0 %v214
    %216 = vmatprep.subr.mxu0 0.0
    %v217 = vand.u32 %v20, 4294901760
    %v218 = vsub.f32 %v20, %v217
    %v219 = vand.u32 %v218, 4294901760
    %v220 = vsub.f32 %v218, %v219
    %v221 = vand.u32 %v220, 4294901760
    %222 = vmatpush1.msra.mxu0 %v221
    %223 = vmatprep.subr.mxu0 0.0
    %v224 = vand.u32 %v19, 4294901760
    %v225 = vsub.f32 %v19, %v224
    %v226 = vand.u32 %v225, 4294901760
    %v227 = vsub.f32 %v225, %v226
    %v228 = vand.u32 %v227, 4294901760
    %229 = vmatpush1.msra.mxu0 %v228
    %230 = vmatprep.subr.mxu0 0.0
    %v231 = vand.u32 %v18, 4294901760
    %v232 = vsub.f32 %v18, %v231
    %v233 = vand.u32 %v232, 4294901760
    %v234 = vsub.f32 %v232, %v233
    %v235 = vand.u32 %v234, 4294901760
    %236 = vmatpush1.msra.mxu0 %v235
    %237 = vmatprep.subr.mxu0 0.0
    %238 = vmatpush2.msra.mxu0 0.0
    %239 = vmatprep.subr.mxu0 0.0
    %240 = vmatpush2.msra.mxu0 0.0
    %241 = vmatprep.subr.mxu0 0.0
    %242 = vmatpush2.msra.mxu0 0.0
    %243 = vmatprep.subr.mxu0 0.0
    %244 = vmatpush2.msra.mxu0 0.0
    %245 = vmatprep.subr.mxu0 0.0
    %246 = vmatpush2.msra.mxu0 0.0
    %247 = vmatprep.subr.mxu0 0.0
    %248 = vmatpush2.msra.mxu0 0.0
    %249 = vmatprep.subr.mxu0 0.0
    %250 = vmatpush2.msra.mxu0 0.0
    %251 = vmatprep.subr.mxu0 0.0
    %252 = vmatpush2.msra.mxu0 0.0
    %253 = vmatprep.subr.mxu0 0.0
    %254 = vmatpush2.msra.mxu0 0.0
    %255 = vmatprep.subr.mxu0 0.0
    %256 = vmatpush2.msra.mxu0 0.0
    %257 = vmatprep.subr.mxu0 0.0
    %258 = vmatpush2.msra.mxu0 0.0
    %259 = vmatprep.subr.mxu0 0.0
    %260 = vmatpush2.msra.mxu0 0.0
    %261 = vmatprep.subr.mxu0 0.0
    %262 = vmatpush2.msra.mxu0 0.0
    %263 = vmatprep.subr.mxu0 0.0
    %264 = vmatpush2.msra.mxu0 0.0
    %265 = vmatprep.subr.mxu0 0.0
    %266 = vmatpush2.msra.mxu0 0.0
    %267 = vmatprep.subr.mxu0 0.0
    %268 = vmatpush2.msra.mxu0 0.0
    %269 = vmatprep.mubr.f32.mxu0 0.0
    %v270 = vand.u32 %v17, 4294901760
    %271 = vmatmul.mubr.f32.gmra.mxu0 %v270
    %v272 = vpop.f32.mrf.mxu0
    %v273 = vadd.f32 %v122, %v272
    %v274 = vpop.f32.mrf.mxu0
    %275 = vdwg.mxu0
    %276 = vmatprep.subr.mxu0 0.0
    %v277 = vand.u32 %v33, 4294901760
    %v278 = vsub.f32 %v33, %v277
    %279 = vmatpush1.msra.mxu0 %v278
    %280 = vmatprep.subr.mxu0 0.0
    %v281 = vand.u32 %v32, 4294901760
    %v282 = vsub.f32 %v32, %v281
    %283 = vmatpush1.msra.mxu0 %v282
    %284 = vmatprep.subr.mxu0 0.0
    %v285 = vand.u32 %v31, 4294901760
    %v286 = vsub.f32 %v31, %v285
    %287 = vmatpush1.msra.mxu0 %v286
    %288 = vmatprep.subr.mxu0 0.0
    %v289 = vand.u32 %v30, 4294901760
    %v290 = vsub.f32 %v30, %v289
    %291 = vmatpush1.msra.mxu0 %v290
    %292 = vmatprep.subr.mxu0 0.0
    %v293 = vand.u32 %v29, 4294901760
    %v294 = vsub.f32 %v29, %v293
    %295 = vmatpush1.msra.mxu0 %v294
    %296 = vmatprep.subr.mxu0 0.0
    %v297 = vand.u32 %v28, 4294901760
    %v298 = vsub.f32 %v28, %v297
    %299 = vmatpush1.msra.mxu0 %v298
    %300 = vmatprep.subr.mxu0 0.0
    %v301 = vand.u32 %v27, 4294901760
    %v302 = vsub.f32 %v27, %v301
    %303 = vmatpush1.msra.mxu0 %v302
    %304 = vmatprep.subr.mxu0 0.0
    %v305 = vand.u32 %v26, 4294901760
    %v306 = vsub.f32 %v26, %v305
    %307 = vmatpush1.msra.mxu0 %v306
    %308 = vmatprep.subr.mxu0 0.0
    %v309 = vand.u32 %v25, 4294901760
    %v310 = vsub.f32 %v25, %v309
    %311 = vmatpush1.msra.mxu0 %v310
    %312 = vmatprep.subr.mxu0 0.0
    %v313 = vand.u32 %v24, 4294901760
    %v314 = vsub.f32 %v24, %v313
    %315 = vmatpush1.msra.mxu0 %v314
    %316 = vmatprep.subr.mxu0 0.0
    %v317 = vand.u32 %v23, 4294901760
    %v318 = vsub.f32 %v23, %v317
    %319 = vmatpush1.msra.mxu0 %v318
    %320 = vmatprep.subr.mxu0 0.0
    %v321 = vand.u32 %v22, 4294901760
    %v322 = vsub.f32 %v22, %v321
    %323 = vmatpush1.msra.mxu0 %v322
    %324 = vmatprep.subr.mxu0 0.0
    %v325 = vand.u32 %v21, 4294901760
    %v326 = vsub.f32 %v21, %v325
    %327 = vmatpush1.msra.mxu0 %v326
    %328 = vmatprep.subr.mxu0 0.0
    %v329 = vand.u32 %v20, 4294901760
    %v330 = vsub.f32 %v20, %v329
    %331 = vmatpush1.msra.mxu0 %v330
    %332 = vmatprep.subr.mxu0 0.0
    %v333 = vand.u32 %v19, 4294901760
    %v334 = vsub.f32 %v19, %v333
    %335 = vmatpush1.msra.mxu0 %v334
    %336 = vmatprep.subr.mxu0 0.0
    %v337 = vand.u32 %v18, 4294901760
    %v338 = vsub.f32 %v18, %v337
    %339 = vmatpush1.msra.mxu0 %v338
    %340 = vmatprep.subr.mxu0 0.0
    %341 = vmatpush2.msra.mxu0 0.0
    %342 = vmatprep.subr.mxu0 0.0
    %343 = vmatpush2.msra.mxu0 0.0
    %344 = vmatprep.subr.mxu0 0.0
    %345 = vmatpush2.msra.mxu0 0.0
    %346 = vmatprep.subr.mxu0 0.0
    %347 = vmatpush2.msra.mxu0 0.0
    %348 = vmatprep.subr.mxu0 0.0
    %349 = vmatpush2.msra.mxu0 0.0
    %350 = vmatprep.subr.mxu0 0.0
    %351 = vmatpush2.msra.mxu0 0.0
    %352 = vmatprep.subr.mxu0 0.0
    %353 = vmatpush2.msra.mxu0 0.0
    %354 = vmatprep.subr.mxu0 0.0
    %355 = vmatpush2.msra.mxu0 0.0
    %356 = vmatprep.subr.mxu0 0.0
    %357 = vmatpush2.msra.mxu0 0.0
    %358 = vmatprep.subr.mxu0 0.0
    %359 = vmatpush2.msra.mxu0 0.0
    %360 = vmatprep.subr.mxu0 0.0
    %361 = vmatpush2.msra.mxu0 0.0
    %362 = vmatprep.subr.mxu0 0.0
    %363 = vmatpush2.msra.mxu0 0.0
    %364 = vmatprep.subr.mxu0 0.0
    %365 = vmatpush2.msra.mxu0 0.0
    %366 = vmatprep.subr.mxu0 0.0
    %367 = vmatpush2.msra.mxu0 0.0
    %368 = vmatprep.subr.mxu0 0.0
    %369 = vmatpush2.msra.mxu0 0.0
    %370 = vmatprep.subr.mxu0 0.0
    %371 = vmatpush2.msra.mxu0 0.0
    %372 = vmatprep.mubr.f32.mxu0 0.0
    %v373 = vand.u32 %v17, 4294901760
    %v374 = vsub.f32 %v17, %v373
    %375 = vmatmul.mubr.f32.gmra.mxu0 %v374
    %v376 = vpop.f32.mrf.mxu0
    %v377 = vadd.f32 %v273, %v376
    %v378 = vpop.f32.mrf.mxu0
    %379 = vdwg.mxu0
    %380 = vmatprep.subr.mxu0 0.0
    %v381 = vand.u32 %v33, 4294901760
    %382 = vmatpush1.msra.mxu0 %v381
    %383 = vmatprep.subr.mxu0 0.0
    %v384 = vand.u32 %v32, 4294901760
    %385 = vmatpush1.msra.mxu0 %v384
    %386 = vmatprep.subr.mxu0 0.0
    %v387 = vand.u32 %v31, 4294901760
    %388 = vmatpush1.msra.mxu0 %v387
    %389 = vmatprep.subr.mxu0 0.0
    %v390 = vand.u32 %v30, 4294901760
    %391 = vmatpush1.msra.mxu0 %v390
    %392 = vmatprep.subr.mxu0 0.0
    %v393 = vand.u32 %v29, 4294901760
    %394 = vmatpush1.msra.mxu0 %v393
    %395 = vmatprep.subr.mxu0 0.0
    %v396 = vand.u32 %v28, 4294901760
    %397 = vmatpush1.msra.mxu0 %v396
    %398 = vmatprep.subr.mxu0 0.0
    %v399 = vand.u32 %v27, 4294901760
    %400 = vmatpush1.msra.mxu0 %v399
    %401 = vmatprep.subr.mxu0 0.0
    %v402 = vand.u32 %v26, 4294901760
    %403 = vmatpush1.msra.mxu0 %v402
    %404 = vmatprep.subr.mxu0 0.0
    %v405 = vand.u32 %v25, 4294901760
    %406 = vmatpush1.msra.mxu0 %v405
    %407 = vmatprep.subr.mxu0 0.0
    %v408 = vand.u32 %v24, 4294901760
    %409 = vmatpush1.msra.mxu0 %v408
    %410 = vmatprep.subr.mxu0 0.0
    %v411 = vand.u32 %v23, 4294901760
    %412 = vmatpush1.msra.mxu0 %v411
    %413 = vmatprep.subr.mxu0 0.0
    %v414 = vand.u32 %v22, 4294901760
    %415 = vmatpush1.msra.mxu0 %v414
    %416 = vmatprep.subr.mxu0 0.0
    %v417 = vand.u32 %v21, 4294901760
    %418 = vmatpush1.msra.mxu0 %v417
    %419 = vmatprep.subr.mxu0 0.0
    %v420 = vand.u32 %v20, 4294901760
    %421 = vmatpush1.msra.mxu0 %v420
    %422 = vmatprep.subr.mxu0 0.0
    %v423 = vand.u32 %v19, 4294901760
    %424 = vmatpush1.msra.mxu0 %v423
    %425 = vmatprep.subr.mxu0 0.0
    %v426 = vand.u32 %v18, 4294901760
    %427 = vmatpush1.msra.mxu0 %v426
    %428 = vmatprep.subr.mxu0 0.0
    %429 = vmatpush2.msra.mxu0 0.0
    %430 = vmatprep.subr.mxu0 0.0
    %431 = vmatpush2.msra.mxu0 0.0
    %432 = vmatprep.subr.mxu0 0.0
    %433 = vmatpush2.msra.mxu0 0.0
    %434 = vmatprep.subr.mxu0 0.0
    %435 = vmatpush2.msra.mxu0 0.0
    %436 = vmatprep.subr.mxu0 0.0
    %437 = vmatpush2.msra.mxu0 0.0
    %438 = vmatprep.subr.mxu0 0.0
    %439 = vmatpush2.msra.mxu0 0.0
    %440 = vmatprep.subr.mxu0 0.0
    %441 = vmatpush2.msra.mxu0 0.0
    %442 = vmatprep.subr.mxu0 0.0
    %443 = vmatpush2.msra.mxu0 0.0
    %444 = vmatprep.subr.mxu0 0.0
    %445 = vmatpush2.msra.mxu0 0.0
    %446 = vmatprep.subr.mxu0 0.0
    %447 = vmatpush2.msra.mxu0 0.0
    %448 = vmatprep.subr.mxu0 0.0
    %449 = vmatpush2.msra.mxu0 0.0
    %450 = vmatprep.subr.mxu0 0.0
    %451 = vmatpush2.msra.mxu0 0.0
    %452 = vmatprep.subr.mxu0 0.0
    %453 = vmatpush2.msra.mxu0 0.0
    %454 = vmatprep.subr.mxu0 0.0
    %455 = vmatpush2.msra.mxu0 0.0
    %456 = vmatprep.subr.mxu0 0.0
    %457 = vmatpush2.msra.mxu0 0.0
    %458 = vmatprep.subr.mxu0 0.0
    %459 = vmatpush2.msra.mxu0 0.0
    %460 = vmatprep.mubr.f32.mxu0 0.0
    %v461 = vand.u32 %v17, 4294901760
    %v462 = vsub.f32 %v17, %v461
    %v463 = vand.u32 %v462, 4294901760
    %464 = vmatmul.mubr.f32.gmra.mxu0 %v463
    %v465 = vpop.f32.mrf.mxu0
    %v466 = vadd.f32 %v377, %v465
    %v467 = vpop.f32.mrf.mxu0
    %468 = vdwg.mxu0
    %469 = vmatprep.subr.mxu0 0.0
    %v470 = vand.u32 %v33, 4294901760
    %v471 = vsub.f32 %v33, %v470
    %v472 = vand.u32 %v471, 4294901760
    %473 = vmatpush1.msra.mxu0 %v472
    %474 = vmatprep.subr.mxu0 0.0
    %v475 = vand.u32 %v32, 4294901760
    %v476 = vsub.f32 %v32, %v475
    %v477 = vand.u32 %v476, 4294901760
    %478 = vmatpush1.msra.mxu0 %v477
    %479 = vmatprep.subr.mxu0 0.0
    %v480 = vand.u32 %v31, 4294901760
    %v481 = vsub.f32 %v31, %v480
    %v482 = vand.u32 %v481, 4294901760
    %483 = vmatpush1.msra.mxu0 %v482
    %484 = vmatprep.subr.mxu0 0.0
    %v485 = vand.u32 %v30, 4294901760
    %v486 = vsub.f32 %v30, %v485
    %v487 = vand.u32 %v486, 4294901760
    %488 = vmatpush1.msra.mxu0 %v487
    %489 = vmatprep.subr.mxu0 0.0
    %v490 = vand.u32 %v29, 4294901760
    %v491 = vsub.f32 %v29, %v490
    %v492 = vand.u32 %v491, 4294901760
    %493 = vmatpush1.msra.mxu0 %v492
    %494 = vmatprep.subr.mxu0 0.0
    %v495 = vand.u32 %v28, 4294901760
    %v496 = vsub.f32 %v28, %v495
    %v497 = vand.u32 %v496, 4294901760
    %498 = vmatpush1.msra.mxu0 %v497
    %499 = vmatprep.subr.mxu0 0.0
    %v500 = vand.u32 %v27, 4294901760
    %v501 = vsub.f32 %v27, %v500
    %v502 = vand.u32 %v501, 4294901760
    %503 = vmatpush1.msra.mxu0 %v502
    %504 = vmatprep.subr.mxu0 0.0
    %v505 = vand.u32 %v26, 4294901760
    %v506 = vsub.f32 %v26, %v505
    %v507 = vand.u32 %v506, 4294901760
    %508 = vmatpush1.msra.mxu0 %v507
    %509 = vmatprep.subr.mxu0 0.0
    %v510 = vand.u32 %v25, 4294901760
    %v511 = vsub.f32 %v25, %v510
    %v512 = vand.u32 %v511, 4294901760
    %513 = vmatpush1.msra.mxu0 %v512
    %514 = vmatprep.subr.mxu0 0.0
    %v515 = vand.u32 %v24, 4294901760
    %v516 = vsub.f32 %v24, %v515
    %v517 = vand.u32 %v516, 4294901760
    %518 = vmatpush1.msra.mxu0 %v517
    %519 = vmatprep.subr.mxu0 0.0
    %v520 = vand.u32 %v23, 4294901760
    %v521 = vsub.f32 %v23, %v520
    %v522 = vand.u32 %v521, 4294901760
    %523 = vmatpush1.msra.mxu0 %v522
    %524 = vmatprep.subr.mxu0 0.0
    %v525 = vand.u32 %v22, 4294901760
    %v526 = vsub.f32 %v22, %v525
    %v527 = vand.u32 %v526, 4294901760
    %528 = vmatpush1.msra.mxu0 %v527
    %529 = vmatprep.subr.mxu0 0.0
    %v530 = vand.u32 %v21, 4294901760
    %v531 = vsub.f32 %v21, %v530
    %v532 = vand.u32 %v531, 4294901760
    %533 = vmatpush1.msra.mxu0 %v532
    %534 = vmatprep.subr.mxu0 0.0
    %v535 = vand.u32 %v20, 4294901760
    %v536 = vsub.f32 %v20, %v535
    %v537 = vand.u32 %v536, 4294901760
    %538 = vmatpush1.msra.mxu0 %v537
    %539 = vmatprep.subr.mxu0 0.0
    %v540 = vand.u32 %v19, 4294901760
    %v541 = vsub.f32 %v19, %v540
    %v542 = vand.u32 %v541, 4294901760
    %543 = vmatpush1.msra.mxu0 %v542
    %544 = vmatprep.subr.mxu0 0.0
    %v545 = vand.u32 %v18, 4294901760
    %v546 = vsub.f32 %v18, %v545
    %v547 = vand.u32 %v546, 4294901760
    %548 = vmatpush1.msra.mxu0 %v547
    %549 = vmatprep.subr.mxu0 0.0
    %550 = vmatpush2.msra.mxu0 0.0
    %551 = vmatprep.subr.mxu0 0.0
    %552 = vmatpush2.msra.mxu0 0.0
    %553 = vmatprep.subr.mxu0 0.0
    %554 = vmatpush2.msra.mxu0 0.0
    %555 = vmatprep.subr.mxu0 0.0
    %556 = vmatpush2.msra.mxu0 0.0
    %557 = vmatprep.subr.mxu0 0.0
    %558 = vmatpush2.msra.mxu0 0.0
    %559 = vmatprep.subr.mxu0 0.0
    %560 = vmatpush2.msra.mxu0 0.0
    %561 = vmatprep.subr.mxu0 0.0
    %562 = vmatpush2.msra.mxu0 0.0
    %563 = vmatprep.subr.mxu0 0.0
    %564 = vmatpush2.msra.mxu0 0.0
    %565 = vmatprep.subr.mxu0 0.0
    %566 = vmatpush2.msra.mxu0 0.0
    %567 = vmatprep.subr.mxu0 0.0
    %568 = vmatpush2.msra.mxu0 0.0
    %569 = vmatprep.subr.mxu0 0.0
    %570 = vmatpush2.msra.mxu0 0.0
    %571 = vmatprep.subr.mxu0 0.0
    %572 = vmatpush2.msra.mxu0 0.0
    %573 = vmatprep.subr.mxu0 0.0
    %574 = vmatpush2.msra.mxu0 0.0
    %575 = vmatprep.subr.mxu0 0.0
    %576 = vmatpush2.msra.mxu0 0.0
    %577 = vmatprep.subr.mxu0 0.0
    %578 = vmatpush2.msra.mxu0 0.0
    %579 = vmatprep.subr.mxu0 0.0
    %580 = vmatpush2.msra.mxu0 0.0
    %581 = vmatprep.mubr.f32.mxu0 0.0
    %v582 = vand.u32 %v17, 4294901760
    %583 = vmatmul.mubr.f32.gmra.mxu0 %v582
    %v584 = vpop.f32.mrf.mxu0
    %v585 = vadd.f32 %v466, %v584
    %v586 = vpop.f32.mrf.mxu0
    %587 = vdwg.mxu0
    %588 = vmatprep.subr.mxu0 0.0
    %v589 = vand.u32 %v33, 4294901760
    %590 = vmatpush1.msra.mxu0 %v589
    %591 = vmatprep.subr.mxu0 0.0
    %v592 = vand.u32 %v32, 4294901760
    %593 = vmatpush1.msra.mxu0 %v592
    %594 = vmatprep.subr.mxu0 0.0
    %v595 = vand.u32 %v31, 4294901760
    %596 = vmatpush1.msra.mxu0 %v595
    %597 = vmatprep.subr.mxu0 0.0
    %v598 = vand.u32 %v30, 4294901760
    %599 = vmatpush1.msra.mxu0 %v598
    %600 = vmatprep.subr.mxu0 0.0
    %v601 = vand.u32 %v29, 4294901760
    %602 = vmatpush1.msra.mxu0 %v601
    %603 = vmatprep.subr.mxu0 0.0
    %v604 = vand.u32 %v28, 4294901760
    %605 = vmatpush1.msra.mxu0 %v604
    %606 = vmatprep.subr.mxu0 0.0
    %v607 = vand.u32 %v27, 4294901760
    %608 = vmatpush1.msra.mxu0 %v607
    %609 = vmatprep.subr.mxu0 0.0
    %v610 = vand.u32 %v26, 4294901760
    %611 = vmatpush1.msra.mxu0 %v610
    %612 = vmatprep.subr.mxu0 0.0
    %v613 = vand.u32 %v25, 4294901760
    %614 = vmatpush1.msra.mxu0 %v613
    %615 = vmatprep.subr.mxu0 0.0
    %v616 = vand.u32 %v24, 4294901760
    %617 = vmatpush1.msra.mxu0 %v616
    %618 = vmatprep.subr.mxu0 0.0
    %v619 = vand.u32 %v23, 4294901760
    %620 = vmatpush1.msra.mxu0 %v619
    %621 = vmatprep.subr.mxu0 0.0
    %v622 = vand.u32 %v22, 4294901760
    %623 = vmatpush1.msra.mxu0 %v622
    %624 = vmatprep.subr.mxu0 0.0
    %v625 = vand.u32 %v21, 4294901760
    %626 = vmatpush1.msra.mxu0 %v625
    %627 = vmatprep.subr.mxu0 0.0
    %v628 = vand.u32 %v20, 4294901760
    %629 = vmatpush1.msra.mxu0 %v628
    %630 = vmatprep.subr.mxu0 0.0
    %v631 = vand.u32 %v19, 4294901760
    %632 = vmatpush1.msra.mxu0 %v631
    %633 = vmatprep.subr.mxu0 0.0
    %v634 = vand.u32 %v18, 4294901760
    %635 = vmatpush1.msra.mxu0 %v634
    %636 = vmatprep.subr.mxu0 0.0
    %637 = vmatpush2.msra.mxu0 0.0
    %638 = vmatprep.subr.mxu0 0.0
    %639 = vmatpush2.msra.mxu0 0.0
    %640 = vmatprep.subr.mxu0 0.0
    %641 = vmatpush2.msra.mxu0 0.0
    %642 = vmatprep.subr.mxu0 0.0
    %643 = vmatpush2.msra.mxu0 0.0
    %644 = vmatprep.subr.mxu0 0.0
    %645 = vmatpush2.msra.mxu0 0.0
    %646 = vmatprep.subr.mxu0 0.0
    %647 = vmatpush2.msra.mxu0 0.0
    %648 = vmatprep.subr.mxu0 0.0
    %649 = vmatpush2.msra.mxu0 0.0
    %650 = vmatprep.subr.mxu0 0.0
    %651 = vmatpush2.msra.mxu0 0.0
    %652 = vmatprep.subr.mxu0 0.0
    %653 = vmatpush2.msra.mxu0 0.0
    %654 = vmatprep.subr.mxu0 0.0
    %655 = vmatpush2.msra.mxu0 0.0
    %656 = vmatprep.subr.mxu0 0.0
    %657 = vmatpush2.msra.mxu0 0.0
    %658 = vmatprep.subr.mxu0 0.0
    %659 = vmatpush2.msra.mxu0 0.0
    %660 = vmatprep.subr.mxu0 0.0
    %661 = vmatpush2.msra.mxu0 0.0
    %662 = vmatprep.subr.mxu0 0.0
    %663 = vmatpush2.msra.mxu0 0.0
    %664 = vmatprep.subr.mxu0 0.0
    %665 = vmatpush2.msra.mxu0 0.0
    %666 = vmatprep.subr.mxu0 0.0
    %667 = vmatpush2.msra.mxu0 0.0
    %668 = vmatprep.mubr.f32.mxu0 0.0
    %v669 = vand.u32 %v17, 4294901760
    %670 = vmatmul.mubr.f32.gmra.mxu0 %v669
    %v671 = vpop.f32.mrf.mxu0
    %v672 = vadd.f32 %v585, %v671
    %v673 = vpop.f32.mrf.mxu0
    %674 = vdwg.mxu0
    %v675 = vsub.f32 %v17, %v672
    %v676 = vmul.f32 %v675, %v675
    %677 = vmatprep.subr.mxu0 0.0
    %v678 = vand.u32 %v33, 4294901760
    %679 = vmatpush1.msra.mxu0 %v678
    %680 = vmatprep.subr.mxu0 0.0
    %v681 = vand.u32 %v32, 4294901760
    %682 = vmatpush1.msra.mxu0 %v681
    %683 = vmatprep.subr.mxu0 0.0
    %v684 = vand.u32 %v31, 4294901760
    %685 = vmatpush1.msra.mxu0 %v684
    %686 = vmatprep.subr.mxu0 0.0
    %v687 = vand.u32 %v30, 4294901760
    %688 = vmatpush1.msra.mxu0 %v687
    %689 = vmatprep.subr.mxu0 0.0
    %v690 = vand.u32 %v29, 4294901760
    %691 = vmatpush1.msra.mxu0 %v690
    %692 = vmatprep.subr.mxu0 0.0
    %v693 = vand.u32 %v28, 4294901760
    %694 = vmatpush1.msra.mxu0 %v693
    %695 = vmatprep.subr.mxu0 0.0
    %v696 = vand.u32 %v27, 4294901760
    %697 = vmatpush1.msra.mxu0 %v696
    %698 = vmatprep.subr.mxu0 0.0
    %v699 = vand.u32 %v26, 4294901760
    %700 = vmatpush1.msra.mxu0 %v699
    %701 = vmatprep.subr.mxu0 0.0
    %v702 = vand.u32 %v25, 4294901760
    %703 = vmatpush1.msra.mxu0 %v702
    %704 = vmatprep.subr.mxu0 0.0
    %v705 = vand.u32 %v24, 4294901760
    %706 = vmatpush1.msra.mxu0 %v705
    %707 = vmatprep.subr.mxu0 0.0
    %v708 = vand.u32 %v23, 4294901760
    %709 = vmatpush1.msra.mxu0 %v708
    %710 = vmatprep.subr.mxu0 0.0
    %v711 = vand.u32 %v22, 4294901760
    %712 = vmatpush1.msra.mxu0 %v711
    %713 = vmatprep.subr.mxu0 0.0
    %v714 = vand.u32 %v21, 4294901760
    %715 = vmatpush1.msra.mxu0 %v714
    %716 = vmatprep.subr.mxu0 0.0
    %v717 = vand.u32 %v20, 4294901760
    %718 = vmatpush1.msra.mxu0 %v717
    %719 = vmatprep.subr.mxu0 0.0
    %v720 = vand.u32 %v19, 4294901760
    %721 = vmatpush1.msra.mxu0 %v720
    %722 = vmatprep.subr.mxu0 0.0
    %v723 = vand.u32 %v18, 4294901760
    %724 = vmatpush1.msra.mxu0 %v723
    %725 = vmatprep.subr.mxu0 0.0
    %726 = vmatpush2.msra.mxu0 0.0
    %727 = vmatprep.subr.mxu0 0.0
    %728 = vmatpush2.msra.mxu0 0.0
    %729 = vmatprep.subr.mxu0 0.0
    %730 = vmatpush2.msra.mxu0 0.0
    %731 = vmatprep.subr.mxu0 0.0
    %732 = vmatpush2.msra.mxu0 0.0
    %733 = vmatprep.subr.mxu0 0.0
    %734 = vmatpush2.msra.mxu0 0.0
    %735 = vmatprep.subr.mxu0 0.0
    %736 = vmatpush2.msra.mxu0 0.0
    %737 = vmatprep.subr.mxu0 0.0
    %738 = vmatpush2.msra.mxu0 0.0
    %739 = vmatprep.subr.mxu0 0.0
    %740 = vmatpush2.msra.mxu0 0.0
    %741 = vmatprep.subr.mxu0 0.0
    %742 = vmatpush2.msra.mxu0 0.0
    %743 = vmatprep.subr.mxu0 0.0
    %744 = vmatpush2.msra.mxu0 0.0
    %745 = vmatprep.subr.mxu0 0.0
    %746 = vmatpush2.msra.mxu0 0.0
    %747 = vmatprep.subr.mxu0 0.0
    %748 = vmatpush2.msra.mxu0 0.0
    %749 = vmatprep.subr.mxu0 0.0
    %750 = vmatpush2.msra.mxu0 0.0
    %751 = vmatprep.subr.mxu0 0.0
    %752 = vmatpush2.msra.mxu0 0.0
    %753 = vmatprep.subr.mxu0 0.0
    %754 = vmatpush2.msra.mxu0 0.0
    %755 = vmatprep.subr.mxu0 0.0
    %756 = vmatpush2.msra.mxu0 0.0
    %757 = vmatprep.mubr.f32.mxu0 0.0
    %v758 = vand.u32 %v676, 4294901760
    %v759 = vsub.f32 %v676, %v758
    %v760 = vand.u32 %v759, 4294901760
    %v761 = vsub.f32 %v759, %v760
    %v762 = vand.u32 %v761, 4294901760
    %763 = vmatmul.mubr.f32.gmra.mxu0 %v762
    %v764 = vpop.f32.mrf.mxu0
    %v765 = vadd.f32 1e-05, %v764
    %v766 = vpop.f32.mrf.mxu0
    %767 = vdwg.mxu0
    %768 = vmatprep.subr.mxu0 0.0
    %v769 = vand.u32 %v33, 4294901760
    %v770 = vsub.f32 %v33, %v769
    %v771 = vand.u32 %v770, 4294901760
    %v772 = vsub.f32 %v770, %v771
    %v773 = vand.u32 %v772, 4294901760
    %774 = vmatpush1.msra.mxu0 %v773
    %775 = vmatprep.subr.mxu0 0.0
    %v776 = vand.u32 %v32, 4294901760
    %v777 = vsub.f32 %v32, %v776
    %v778 = vand.u32 %v777, 4294901760
    %v779 = vsub.f32 %v777, %v778
    %v780 = vand.u32 %v779, 4294901760
    %781 = vmatpush1.msra.mxu0 %v780
    %782 = vmatprep.subr.mxu0 0.0
    %v783 = vand.u32 %v31, 4294901760
    %v784 = vsub.f32 %v31, %v783
    %v785 = vand.u32 %v784, 4294901760
    %v786 = vsub.f32 %v784, %v785
    %v787 = vand.u32 %v786, 4294901760
    %788 = vmatpush1.msra.mxu0 %v787
    %789 = vmatprep.subr.mxu0 0.0
    %v790 = vand.u32 %v30, 4294901760
    %v791 = vsub.f32 %v30, %v790
    %v792 = vand.u32 %v791, 4294901760
    %v793 = vsub.f32 %v791, %v792
    %v794 = vand.u32 %v793, 4294901760
    %795 = vmatpush1.msra.mxu0 %v794
    %796 = vmatprep.subr.mxu0 0.0
    %v797 = vand.u32 %v29, 4294901760
    %v798 = vsub.f32 %v29, %v797
    %v799 = vand.u32 %v798, 4294901760
    %v800 = vsub.f32 %v798, %v799
    %v801 = vand.u32 %v800, 4294901760
    %802 = vmatpush1.msra.mxu0 %v801
    %803 = vmatprep.subr.mxu0 0.0
    %v804 = vand.u32 %v28, 4294901760
    %v805 = vsub.f32 %v28, %v804
    %v806 = vand.u32 %v805, 4294901760
    %v807 = vsub.f32 %v805, %v806
    %v808 = vand.u32 %v807, 4294901760
    %809 = vmatpush1.msra.mxu0 %v808
    %810 = vmatprep.subr.mxu0 0.0
    %v811 = vand.u32 %v27, 4294901760
    %v812 = vsub.f32 %v27, %v811
    %v813 = vand.u32 %v812, 4294901760
    %v814 = vsub.f32 %v812, %v813
    %v815 = vand.u32 %v814, 4294901760
    %816 = vmatpush1.msra.mxu0 %v815
    %817 = vmatprep.subr.mxu0 0.0
    %v818 = vand.u32 %v26, 4294901760
    %v819 = vsub.f32 %v26, %v818
    %v820 = vand.u32 %v819, 4294901760
    %v821 = vsub.f32 %v819, %v820
    %v822 = vand.u32 %v821, 4294901760
    %823 = vmatpush1.msra.mxu0 %v822
    %824 = vmatprep.subr.mxu0 0.0
    %v825 = vand.u32 %v25, 4294901760
    %v826 = vsub.f32 %v25, %v825
    %v827 = vand.u32 %v826, 4294901760
    %v828 = vsub.f32 %v826, %v827
    %v829 = vand.u32 %v828, 4294901760
    %830 = vmatpush1.msra.mxu0 %v829
    %831 = vmatprep.subr.mxu0 0.0
    %v832 = vand.u32 %v24, 4294901760
    %v833 = vsub.f32 %v24, %v832
    %v834 = vand.u32 %v833, 4294901760
    %v835 = vsub.f32 %v833, %v834
    %v836 = vand.u32 %v835, 4294901760
    %837 = vmatpush1.msra.mxu0 %v836
    %838 = vmatprep.subr.mxu0 0.0
    %v839 = vand.u32 %v23, 4294901760
    %v840 = vsub.f32 %v23, %v839
    %v841 = vand.u32 %v840, 4294901760
    %v842 = vsub.f32 %v840, %v841
    %v843 = vand.u32 %v842, 4294901760
    %844 = vmatpush1.msra.mxu0 %v843
    %845 = vmatprep.subr.mxu0 0.0
    %v846 = vand.u32 %v22, 4294901760
    %v847 = vsub.f32 %v22, %v846
    %v848 = vand.u32 %v847, 4294901760
    %v849 = vsub.f32 %v847, %v848
    %v850 = vand.u32 %v849, 4294901760
    %851 = vmatpush1.msra.mxu0 %v850
    %852 = vmatprep.subr.mxu0 0.0
    %v853 = vand.u32 %v21, 4294901760
    %v854 = vsub.f32 %v21, %v853
    %v855 = vand.u32 %v854, 4294901760
    %v856 = vsub.f32 %v854, %v855
    %v857 = vand.u32 %v856, 4294901760
    %858 = vmatpush1.msra.mxu0 %v857
    %859 = vmatprep.subr.mxu0 0.0
    %v860 = vand.u32 %v20, 4294901760
    %v861 = vsub.f32 %v20, %v860
    %v862 = vand.u32 %v861, 4294901760
    %v863 = vsub.f32 %v861, %v862
    %v864 = vand.u32 %v863, 4294901760
    %865 = vmatpush1.msra.mxu0 %v864
    %866 = vmatprep.subr.mxu0 0.0
    %v867 = vand.u32 %v19, 4294901760
    %v868 = vsub.f32 %v19, %v867
    %v869 = vand.u32 %v868, 4294901760
    %v870 = vsub.f32 %v868, %v869
    %v871 = vand.u32 %v870, 4294901760
    %872 = vmatpush1.msra.mxu0 %v871
    %873 = vmatprep.subr.mxu0 0.0
    %v874 = vand.u32 %v18, 4294901760
    %v875 = vsub.f32 %v18, %v874
    %v876 = vand.u32 %v875, 4294901760
    %v877 = vsub.f32 %v875, %v876
    %v878 = vand.u32 %v877, 4294901760
    %879 = vmatpush1.msra.mxu0 %v878
    %880 = vmatprep.subr.mxu0 0.0
    %881 = vmatpush2.msra.mxu0 0.0
    %882 = vmatprep.subr.mxu0 0.0
    %883 = vmatpush2.msra.mxu0 0.0
    %884 = vmatprep.subr.mxu0 0.0
    %885 = vmatpush2.msra.mxu0 0.0
    %886 = vmatprep.subr.mxu0 0.0
    %887 = vmatpush2.msra.mxu0 0.0
    %888 = vmatprep.subr.mxu0 0.0
    %889 = vmatpush2.msra.mxu0 0.0
    %890 = vmatprep.subr.mxu0 0.0
    %891 = vmatpush2.msra.mxu0 0.0
    %892 = vmatprep.subr.mxu0 0.0
    %893 = vmatpush2.msra.mxu0 0.0
    %894 = vmatprep.subr.mxu0 0.0
    %895 = vmatpush2.msra.mxu0 0.0
    %896 = vmatprep.subr.mxu0 0.0
    %897 = vmatpush2.msra.mxu0 0.0
    %898 = vmatprep.subr.mxu0 0.0
    %899 = vmatpush2.msra.mxu0 0.0
    %900 = vmatprep.subr.mxu0 0.0
    %901 = vmatpush2.msra.mxu0 0.0
    %902 = vmatprep.subr.mxu0 0.0
    %903 = vmatpush2.msra.mxu0 0.0
    %904 = vmatprep.subr.mxu0 0.0
    %905 = vmatpush2.msra.mxu0 0.0
    %906 = vmatprep.subr.mxu0 0.0
    %907 = vmatpush2.msra.mxu0 0.0
    %908 = vmatprep.subr.mxu0 0.0
    %909 = vmatpush2.msra.mxu0 0.0
    %910 = vmatprep.subr.mxu0 0.0
    %911 = vmatpush2.msra.mxu0 0.0
    %912 = vmatprep.mubr.f32.mxu0 0.0
    %v913 = vand.u32 %v676, 4294901760
    %914 = vmatmul.mubr.f32.gmra.mxu0 %v913
    %v915 = vpop.f32.mrf.mxu0
    %v916 = vadd.f32 %v765, %v915
    %v917 = vpop.f32.mrf.mxu0
    %918 = vdwg.mxu0
    %919 = vmatprep.subr.mxu0 0.0
    %v920 = vand.u32 %v33, 4294901760
    %v921 = vsub.f32 %v33, %v920
    %922 = vmatpush1.msra.mxu0 %v921
    %923 = vmatprep.subr.mxu0 0.0
    %v924 = vand.u32 %v32, 4294901760
    %v925 = vsub.f32 %v32, %v924
    %926 = vmatpush1.msra.mxu0 %v925
    %927 = vmatprep.subr.mxu0 0.0
    %v928 = vand.u32 %v31, 4294901760
    %v929 = vsub.f32 %v31, %v928
    %930 = vmatpush1.msra.mxu0 %v929
    %931 = vmatprep.subr.mxu0 0.0
    %v932 = vand.u32 %v30, 4294901760
    %v933 = vsub.f32 %v30, %v932
    %934 = vmatpush1.msra.mxu0 %v933
    %935 = vmatprep.subr.mxu0 0.0
    %v936 = vand.u32 %v29, 4294901760
    %v937 = vsub.f32 %v29, %v936
    %938 = vmatpush1.msra.mxu0 %v937
    %939 = vmatprep.subr.mxu0 0.0
    %v940 = vand.u32 %v28, 4294901760
    %v941 = vsub.f32 %v28, %v940
    %942 = vmatpush1.msra.mxu0 %v941
    %943 = vmatprep.subr.mxu0 0.0
    %v944 = vand.u32 %v27, 4294901760
    %v945 = vsub.f32 %v27, %v944
    %946 = vmatpush1.msra.mxu0 %v945
    %947 = vmatprep.subr.mxu0 0.0
    %v948 = vand.u32 %v26, 4294901760
    %v949 = vsub.f32 %v26, %v948
    %950 = vmatpush1.msra.mxu0 %v949
    %951 = vmatprep.subr.mxu0 0.0
    %v952 = vand.u32 %v25, 4294901760
    %v953 = vsub.f32 %v25, %v952
    %954 = vmatpush1.msra.mxu0 %v953
    %955 = vmatprep.subr.mxu0 0.0
    %v956 = vand.u32 %v24, 4294901760
    %v957 = vsub.f32 %v24, %v956
    %958 = vmatpush1.msra.mxu0 %v957
    %959 = vmatprep.subr.mxu0 0.0
    %v960 = vand.u32 %v23, 4294901760
    %v961 = vsub.f32 %v23, %v960
    %962 = vmatpush1.msra.mxu0 %v961
    %963 = vmatprep.subr.mxu0 0.0
    %v964 = vand.u32 %v22, 4294901760
    %v965 = vsub.f32 %v22, %v964
    %966 = vmatpush1.msra.mxu0 %v965
    %967 = vmatprep.subr.mxu0 0.0
    %v968 = vand.u32 %v21, 4294901760
    %v969 = vsub.f32 %v21, %v968
    %970 = vmatpush1.msra.mxu0 %v969
    %971 = vmatprep.subr.mxu0 0.0
    %v972 = vand.u32 %v20, 4294901760
    %v973 = vsub.f32 %v20, %v972
    %974 = vmatpush1.msra.mxu0 %v973
    %975 = vmatprep.subr.mxu0 0.0
    %v976 = vand.u32 %v19, 4294901760
    %v977 = vsub.f32 %v19, %v976
    %978 = vmatpush1.msra.mxu0 %v977
    %979 = vmatprep.subr.mxu0 0.0
    %v980 = vand.u32 %v18, 4294901760
    %v981 = vsub.f32 %v18, %v980
    %982 = vmatpush1.msra.mxu0 %v981
    %983 = vmatprep.subr.mxu0 0.0
    %984 = vmatpush2.msra.mxu0 0.0
    %985 = vmatprep.subr.mxu0 0.0
    %986 = vmatpush2.msra.mxu0 0.0
    %987 = vmatprep.subr.mxu0 0.0
    %988 = vmatpush2.msra.mxu0 0.0
    %989 = vmatprep.subr.mxu0 0.0
    %990 = vmatpush2.msra.mxu0 0.0
    %991 = vmatprep.subr.mxu0 0.0
    %992 = vmatpush2.msra.mxu0 0.0
    %993 = vmatprep.subr.mxu0 0.0
    %994 = vmatpush2.msra.mxu0 0.0
    %995 = vmatprep.subr.mxu0 0.0
    %996 = vmatpush2.msra.mxu0 0.0
    %997 = vmatprep.subr.mxu0 0.0
    %998 = vmatpush2.msra.mxu0 0.0
    %999 = vmatprep.subr.mxu0 0.0
    %1000 = vmatpush2.msra.mxu0 0.0
    %1001 = vmatprep.subr.mxu0 0.0
    %1002 = vmatpush2.msra.mxu0 0.0
    %1003 = vmatprep.subr.mxu0 0.0
    %1004 = vmatpush2.msra.mxu0 0.0
    %1005 = vmatprep.subr.mxu0 0.0
    %1006 = vmatpush2.msra.mxu0 0.0
    %1007 = vmatprep.subr.mxu0 0.0
    %1008 = vmatpush2.msra.mxu0 0.0
    %1009 = vmatprep.subr.mxu0 0.0
    %1010 = vmatpush2.msra.mxu0 0.0
    %1011 = vmatprep.subr.mxu0 0.0
    %1012 = vmatpush2.msra.mxu0 0.0
    %1013 = vmatprep.subr.mxu0 0.0
    %1014 = vmatpush2.msra.mxu0 0.0
    %1015 = vmatprep.mubr.f32.mxu0 0.0
    %v1016 = vand.u32 %v676, 4294901760
    %v1017 = vsub.f32 %v676, %v1016
    %1018 = vmatmul.mubr.f32.gmra.mxu0 %v1017
    %v1019 = vpop.f32.mrf.mxu0
    %v1020 = vadd.f32 %v916, %v1019
    %v1021 = vpop.f32.mrf.mxu0
    %1022 = vdwg.mxu0
    %1023 = vmatprep.subr.mxu0 0.0
    %v1024 = vand.u32 %v33, 4294901760
    %1025 = vmatpush1.msra.mxu0 %v1024
    %1026 = vmatprep.subr.mxu0 0.0
    %v1027 = vand.u32 %v32, 4294901760
    %1028 = vmatpush1.msra.mxu0 %v1027
    %1029 = vmatprep.subr.mxu0 0.0
    %v1030 = vand.u32 %v31, 4294901760
    %1031 = vmatpush1.msra.mxu0 %v1030
    %1032 = vmatprep.subr.mxu0 0.0
    %v1033 = vand.u32 %v30, 4294901760
    %1034 = vmatpush1.msra.mxu0 %v1033
    %1035 = vmatprep.subr.mxu0 0.0
    %v1036 = vand.u32 %v29, 4294901760
    %1037 = vmatpush1.msra.mxu0 %v1036
    %1038 = vmatprep.subr.mxu0 0.0
    %v1039 = vand.u32 %v28, 4294901760
    %1040 = vmatpush1.msra.mxu0 %v1039
    %1041 = vmatprep.subr.mxu0 0.0
    %v1042 = vand.u32 %v27, 4294901760
    %1043 = vmatpush1.msra.mxu0 %v1042
    %1044 = vmatprep.subr.mxu0 0.0
    %v1045 = vand.u32 %v26, 4294901760
    %1046 = vmatpush1.msra.mxu0 %v1045
    %1047 = vmatprep.subr.mxu0 0.0
    %v1048 = vand.u32 %v25, 4294901760
    %1049 = vmatpush1.msra.mxu0 %v1048
    %1050 = vmatprep.subr.mxu0 0.0
    %v1051 = vand.u32 %v24, 4294901760
    %1052 = vmatpush1.msra.mxu0 %v1051
    %1053 = vmatprep.subr.mxu0 0.0
    %v1054 = vand.u32 %v23, 4294901760
    %1055 = vmatpush1.msra.mxu0 %v1054
    %1056 = vmatprep.subr.mxu0 0.0
    %v1057 = vand.u32 %v22, 4294901760
    %1058 = vmatpush1.msra.mxu0 %v1057
    %1059 = vmatprep.subr.mxu0 0.0
    %v1060 = vand.u32 %v21, 4294901760
    %1061 = vmatpush1.msra.mxu0 %v1060
    %1062 = vmatprep.subr.mxu0 0.0
    %v1063 = vand.u32 %v20, 4294901760
    %1064 = vmatpush1.msra.mxu0 %v1063
    %1065 = vmatprep.subr.mxu0 0.0
    %v1066 = vand.u32 %v19, 4294901760
    %1067 = vmatpush1.msra.mxu0 %v1066
    %1068 = vmatprep.subr.mxu0 0.0
    %v1069 = vand.u32 %v18, 4294901760
    %1070 = vmatpush1.msra.mxu0 %v1069
    %1071 = vmatprep.subr.mxu0 0.0
    %1072 = vmatpush2.msra.mxu0 0.0
    %1073 = vmatprep.subr.mxu0 0.0
    %1074 = vmatpush2.msra.mxu0 0.0
    %1075 = vmatprep.subr.mxu0 0.0
    %1076 = vmatpush2.msra.mxu0 0.0
    %1077 = vmatprep.subr.mxu0 0.0
    %1078 = vmatpush2.msra.mxu0 0.0
    %1079 = vmatprep.subr.mxu0 0.0
    %1080 = vmatpush2.msra.mxu0 0.0
    %1081 = vmatprep.subr.mxu0 0.0
    %1082 = vmatpush2.msra.mxu0 0.0
    %1083 = vmatprep.subr.mxu0 0.0
    %1084 = vmatpush2.msra.mxu0 0.0
    %1085 = vmatprep.subr.mxu0 0.0
    %1086 = vmatpush2.msra.mxu0 0.0
    %1087 = vmatprep.subr.mxu0 0.0
    %1088 = vmatpush2.msra.mxu0 0.0
    %1089 = vmatprep.subr.mxu0 0.0
    %1090 = vmatpush2.msra.mxu0 0.0
    %1091 = vmatprep.subr.mxu0 0.0
    %1092 = vmatpush2.msra.mxu0 0.0
    %1093 = vmatprep.subr.mxu0 0.0
    %1094 = vmatpush2.msra.mxu0 0.0
    %1095 = vmatprep.subr.mxu0 0.0
    %1096 = vmatpush2.msra.mxu0 0.0
    %1097 = vmatprep.subr.mxu0 0.0
    %1098 = vmatpush2.msra.mxu0 0.0
    %1099 = vmatprep.subr.mxu0 0.0
    %1100 = vmatpush2.msra.mxu0 0.0
    %1101 = vmatprep.subr.mxu0 0.0
    %1102 = vmatpush2.msra.mxu0 0.0
    %1103 = vmatprep.mubr.f32.mxu0 0.0
    %v1104 = vand.u32 %v676, 4294901760
    %v1105 = vsub.f32 %v676, %v1104
    %v1106 = vand.u32 %v1105, 4294901760
    %1107 = vmatmul.mubr.f32.gmra.mxu0 %v1106
    %v1108 = vpop.f32.mrf.mxu0
    %v1109 = vadd.f32 %v1020, %v1108
    %v1110 = vpop.f32.mrf.mxu0
    %1111 = vdwg.mxu0
    %1112 = vmatprep.subr.mxu0 0.0
    %v1113 = vand.u32 %v33, 4294901760
    %v1114 = vsub.f32 %v33, %v1113
    %v1115 = vand.u32 %v1114, 4294901760
    %1116 = vmatpush1.msra.mxu0 %v1115
    %1117 = vmatprep.subr.mxu0 0.0
    %v1118 = vand.u32 %v32, 4294901760
    %v1119 = vsub.f32 %v32, %v1118
    %v1120 = vand.u32 %v1119, 4294901760
    %1121 = vmatpush1.msra.mxu0 %v1120
    %1122 = vmatprep.subr.mxu0 0.0
    %v1123 = vand.u32 %v31, 4294901760
    %v1124 = vsub.f32 %v31, %v1123
    %v1125 = vand.u32 %v1124, 4294901760
    %1126 = vmatpush1.msra.mxu0 %v1125
    %1127 = vmatprep.subr.mxu0 0.0
    %v1128 = vand.u32 %v30, 4294901760
    %v1129 = vsub.f32 %v30, %v1128
    %v1130 = vand.u32 %v1129, 4294901760
    %1131 = vmatpush1.msra.mxu0 %v1130
    %1132 = vmatprep.subr.mxu0 0.0
    %v1133 = vand.u32 %v29, 4294901760
    %v1134 = vsub.f32 %v29, %v1133
    %v1135 = vand.u32 %v1134, 4294901760
    %1136 = vmatpush1.msra.mxu0 %v1135
    %1137 = vmatprep.subr.mxu0 0.0
    %v1138 = vand.u32 %v28, 4294901760
    %v1139 = vsub.f32 %v28, %v1138
    %v1140 = vand.u32 %v1139, 4294901760
    %1141 = vmatpush1.msra.mxu0 %v1140
    %1142 = vmatprep.subr.mxu0 0.0
    %v1143 = vand.u32 %v27, 4294901760
    %v1144 = vsub.f32 %v27, %v1143
    %v1145 = vand.u32 %v1144, 4294901760
    %1146 = vmatpush1.msra.mxu0 %v1145
    %1147 = vmatprep.subr.mxu0 0.0
    %v1148 = vand.u32 %v26, 4294901760
    %v1149 = vsub.f32 %v26, %v1148
    %v1150 = vand.u32 %v1149, 4294901760
    %1151 = vmatpush1.msra.mxu0 %v1150
    %1152 = vmatprep.subr.mxu0 0.0
    %v1153 = vand.u32 %v25, 4294901760
    %v1154 = vsub.f32 %v25, %v1153
    %v1155 = vand.u32 %v1154, 4294901760
    %1156 = vmatpush1.msra.mxu0 %v1155
    %1157 = vmatprep.subr.mxu0 0.0
    %v1158 = vand.u32 %v24, 4294901760
    %v1159 = vsub.f32 %v24, %v1158
    %v1160 = vand.u32 %v1159, 4294901760
    %1161 = vmatpush1.msra.mxu0 %v1160
    %1162 = vmatprep.subr.mxu0 0.0
    %v1163 = vand.u32 %v23, 4294901760
    %v1164 = vsub.f32 %v23, %v1163
    %v1165 = vand.u32 %v1164, 4294901760
    %1166 = vmatpush1.msra.mxu0 %v1165
    %1167 = vmatprep.subr.mxu0 0.0
    %v1168 = vand.u32 %v22, 4294901760
    %v1169 = vsub.f32 %v22, %v1168
    %v1170 = vand.u32 %v1169, 4294901760
    %1171 = vmatpush1.msra.mxu0 %v1170
    %1172 = vmatprep.subr.mxu0 0.0
    %v1173 = vand.u32 %v21, 4294901760
    %v1174 = vsub.f32 %v21, %v1173
    %v1175 = vand.u32 %v1174, 4294901760
    %1176 = vmatpush1.msra.mxu0 %v1175
    %1177 = vmatprep.subr.mxu0 0.0
    %v1178 = vand.u32 %v20, 4294901760
    %v1179 = vsub.f32 %v20, %v1178
    %v1180 = vand.u32 %v1179, 4294901760
    %1181 = vmatpush1.msra.mxu0 %v1180
    %1182 = vmatprep.subr.mxu0 0.0
    %v1183 = vand.u32 %v19, 4294901760
    %v1184 = vsub.f32 %v19, %v1183
    %v1185 = vand.u32 %v1184, 4294901760
    %1186 = vmatpush1.msra.mxu0 %v1185
    %1187 = vmatprep.subr.mxu0 0.0
    %v1188 = vand.u32 %v18, 4294901760
    %v1189 = vsub.f32 %v18, %v1188
    %v1190 = vand.u32 %v1189, 4294901760
    %1191 = vmatpush1.msra.mxu0 %v1190
    %1192 = vmatprep.subr.mxu0 0.0
    %1193 = vmatpush2.msra.mxu0 0.0
    %1194 = vmatprep.subr.mxu0 0.0
    %1195 = vmatpush2.msra.mxu0 0.0
    %1196 = vmatprep.subr.mxu0 0.0
    %1197 = vmatpush2.msra.mxu0 0.0
    %1198 = vmatprep.subr.mxu0 0.0
    %1199 = vmatpush2.msra.mxu0 0.0
    %1200 = vmatprep.subr.mxu0 0.0
    %1201 = vmatpush2.msra.mxu0 0.0
    %1202 = vmatprep.subr.mxu0 0.0
    %1203 = vmatpush2.msra.mxu0 0.0
    %1204 = vmatprep.subr.mxu0 0.0
    %1205 = vmatpush2.msra.mxu0 0.0
    %1206 = vmatprep.subr.mxu0 0.0
    %1207 = vmatpush2.msra.mxu0 0.0
    %1208 = vmatprep.subr.mxu0 0.0
    %1209 = vmatpush2.msra.mxu0 0.0
    %1210 = vmatprep.subr.mxu0 0.0
    %1211 = vmatpush2.msra.mxu0 0.0
    %1212 = vmatprep.subr.mxu0 0.0
    %1213 = vmatpush2.msra.mxu0 0.0
    %1214 = vmatprep.subr.mxu0 0.0
    %1215 = vmatpush2.msra.mxu0 0.0
    %1216 = vmatprep.subr.mxu0 0.0
    %1217 = vmatpush2.msra.mxu0 0.0
    %1218 = vmatprep.subr.mxu0 0.0
    %1219 = vmatpush2.msra.mxu0 0.0
    %1220 = vmatprep.subr.mxu0 0.0
    %1221 = vmatpush2.msra.mxu0 0.0
    %1222 = vmatprep.subr.mxu0 0.0
    %1223 = vmatpush2.msra.mxu0 0.0
    %1224 = vmatprep.mubr.f32.mxu0 0.0
    %v1225 = vand.u32 %v676, 4294901760
    %1226 = vmatmul.mubr.f32.gmra.mxu0 %v1225
    %v1227 = vpop.f32.mrf.mxu0
    %v1228 = vadd.f32 %v1109, %v1227
    %v1229 = vpop.f32.mrf.mxu0
    %1230 = vdwg.mxu0
    %1231 = vmatprep.subr.mxu0 0.0
    %v1232 = vand.u32 %v33, 4294901760
    %1233 = vmatpush1.msra.mxu0 %v1232
    %1234 = vmatprep.subr.mxu0 0.0
    %v1235 = vand.u32 %v32, 4294901760
    %1236 = vmatpush1.msra.mxu0 %v1235
    %1237 = vmatprep.subr.mxu0 0.0
    %v1238 = vand.u32 %v31, 4294901760
    %1239 = vmatpush1.msra.mxu0 %v1238
    %1240 = vmatprep.subr.mxu0 0.0
    %v1241 = vand.u32 %v30, 4294901760
    %1242 = vmatpush1.msra.mxu0 %v1241
    %1243 = vmatprep.subr.mxu0 0.0
    %v1244 = vand.u32 %v29, 4294901760
    %1245 = vmatpush1.msra.mxu0 %v1244
    %1246 = vmatprep.subr.mxu0 0.0
    %v1247 = vand.u32 %v28, 4294901760
    %1248 = vmatpush1.msra.mxu0 %v1247
    %1249 = vmatprep.subr.mxu0 0.0
    %v1250 = vand.u32 %v27, 4294901760
    %1251 = vmatpush1.msra.mxu0 %v1250
    %1252 = vmatprep.subr.mxu0 0.0
    %v1253 = vand.u32 %v26, 4294901760
    %1254 = vmatpush1.msra.mxu0 %v1253
    %1255 = vmatprep.subr.mxu0 0.0
    %v1256 = vand.u32 %v25, 4294901760
    %1257 = vmatpush1.msra.mxu0 %v1256
    %1258 = vmatprep.subr.mxu0 0.0
    %v1259 = vand.u32 %v24, 4294901760
    %1260 = vmatpush1.msra.mxu0 %v1259
    %1261 = vmatprep.subr.mxu0 0.0
    %v1262 = vand.u32 %v23, 4294901760
    %1263 = vmatpush1.msra.mxu0 %v1262
    %1264 = vmatprep.subr.mxu0 0.0
    %v1265 = vand.u32 %v22, 4294901760
    %1266 = vmatpush1.msra.mxu0 %v1265
    %1267 = vmatprep.subr.mxu0 0.0
    %v1268 = vand.u32 %v21, 4294901760
    %1269 = vmatpush1.msra.mxu0 %v1268
    %1270 = vmatprep.subr.mxu0 0.0
    %v1271 = vand.u32 %v20, 4294901760
    %1272 = vmatpush1.msra.mxu0 %v1271
    %1273 = vmatprep.subr.mxu0 0.0
    %v1274 = vand.u32 %v19, 4294901760
    %1275 = vmatpush1.msra.mxu0 %v1274
    %1276 = vmatprep.subr.mxu0 0.0
    %v1277 = vand.u32 %v18, 4294901760
    %1278 = vmatpush1.msra.mxu0 %v1277
    %1279 = vmatprep.subr.mxu0 0.0
    %1280 = vmatpush2.msra.mxu0 0.0
    %1281 = vmatprep.subr.mxu0 0.0
    %1282 = vmatpush2.msra.mxu0 0.0
    %1283 = vmatprep.subr.mxu0 0.0
    %1284 = vmatpush2.msra.mxu0 0.0
    %1285 = vmatprep.subr.mxu0 0.0
    %1286 = vmatpush2.msra.mxu0 0.0
    %1287 = vmatprep.subr.mxu0 0.0
    %1288 = vmatpush2.msra.mxu0 0.0
    %1289 = vmatprep.subr.mxu0 0.0
    %1290 = vmatpush2.msra.mxu0 0.0
    %1291 = vmatprep.subr.mxu0 0.0
    %1292 = vmatpush2.msra.mxu0 0.0
    %1293 = vmatprep.subr.mxu0 0.0
    %1294 = vmatpush2.msra.mxu0 0.0
    %1295 = vmatprep.subr.mxu0 0.0
    %1296 = vmatpush2.msra.mxu0 0.0
    %1297 = vmatprep.subr.mxu0 0.0
    %1298 = vmatpush2.msra.mxu0 0.0
    %1299 = vmatprep.subr.mxu0 0.0
    %1300 = vmatpush2.msra.mxu0 0.0
    %1301 = vmatprep.subr.mxu0 0.0
    %1302 = vmatpush2.msra.mxu0 0.0
    %1303 = vmatprep.subr.mxu0 0.0
    %1304 = vmatpush2.msra.mxu0 0.0
    %1305 = vmatprep.subr.mxu0 0.0
    %1306 = vmatpush2.msra.mxu0 0.0
    %1307 = vmatprep.subr.mxu0 0.0
    %1308 = vmatpush2.msra.mxu0 0.0
    %1309 = vmatprep.subr.mxu0 0.0
    %1310 = vmatpush2.msra.mxu0 0.0
    %1311 = vmatprep.mubr.f32.mxu0 0.0
    %v1312 = vand.u32 %v676, 4294901760
    %1313 = vmatmul.mubr.f32.gmra.mxu0 %v1312
    %v1314 = vpop.f32.mrf.mxu0
    %v1315 = vadd.f32 %v1228, %v1314
    %v1316 = vpop.f32.mrf.mxu0
    %1317 = vdwg.mxu0
    %v1318 = vrsqrt.pop %v1315
    %v1319 = vmul.f32 %v675, %v1318
    %v1320 = vld [vmem:[%s1] sm:$0x1]
    %v1322 = vlaneseq
    %v1323 = vshrl.u32 %v1322, 7
    %v1324 = vsub.s32 0, %v1323
    %v1325 = vrot.slane %v1320, %v1324
    %v1327 = vmul.f32 %v1319, %v1325
    %v1328 = vld [vmem:[%s2] sm:$0x1]
    %v1330 = vlaneseq
    %v1331 = vshrl.u32 %v1330, 7
    %v1332 = vsub.s32 0, %v1331
    %v1333 = vrot.slane %v1328, %v1332
    %v1335 = vadd.f32 %v1327, %v1333
    %1336 = vst [vmem:[#allocation2] sm:$0xff] %v1335
    // Predicated region
    $region18: #{layer_norm.1} parent=1 // pred_check
      _
    $region19: #{layer_norm.1} parent=1 // pred_check_branch
      %1338 = sbr.rel (0) target = $region21
    $region20: #{layer_norm.1} parent=1 // pred_region
      // Predicated region
      $region22: #{layer_norm.1} parent=20 // pred_check
        _
      $region23: #{layer_norm.1} parent=20 // pred_check_branch
        %1340 = sbr.rel (0) target = $region25
      $region24: #{layer_norm.1} parent=20 // pred_region
        // Predicated region
        $region26: #{layer_norm.1} parent=24 // pred_check
          _
        $region27: #{layer_norm.1} parent=24 // pred_check_branch
          %1342 = sbr.rel target = $region29
        $region28: #{layer_norm.1} parent=24 // pred_region
          // Predicated region
          $region41: #{layer_norm.1} parent=28 // pred_check
            _
          $region42: #{layer_norm.1} parent=28 // pred_check_branch
            %1358 = sbr.rel (0) target = $region44
          $region43: #{layer_norm.1} parent=28 // pred_region
            %s1360 = ssub.s32 16, 1
            loop: start=0, step=1, limit=1
            $region45: #{layer_norm.1} parent=43 // loop_pre_header
              _
            $region46: #{layer_norm.1} parent=43 // loop_header
              %s1362 = sphi 0, %s1366
              %p1363 = scmp.ge.s32.totalorder %s1362, 1
              %s1367 = sphi [#allocation2], [#allocation2]
              %s1368 = sphi %s4, %s4
            $region47: #{layer_norm.1} parent=43 // loop_header_branch
              %1365 = sbr.rel (%p1363) target = $region51
            $region48: #{layer_norm.1} parent=43 // loop_body
              %v1369 = vld [vmem:[%s1367] sm:%s1360]
              %1370 = vst [vmem:[%s1368] sm:%s1360] %v1369
            $region49: #{layer_norm.1} parent=43 // loop_footer
              %s1366 = sadd.s32 1, %s1362
            $region50: #{layer_norm.1} parent=43 // loop_footer_branch
              %1361 = sbr.rel target = $region46
            $region51: #{layer_norm.1} parent=43 // loop_exit
              _
          $region44: #{layer_norm.1} parent=28 // pred_fallthru
            _
        $region29: #{layer_norm.1} parent=24 // pred_fallthru
          _
        // Predicated region
        $region30: #{layer_norm.1} parent=24 // pred_check
          _
        $region31: #{layer_norm.1} parent=24 // pred_check_branch
          %1344 = sbr.rel (0) target = $region33
        $region32: #{layer_norm.1} parent=24 // pred_region
          %s1346 = ssub.s32 16, 1
          loop: start=0, step=1, limit=1
          $region34: #{layer_norm.1} parent=32 // loop_pre_header
            _
          $region35: #{layer_norm.1} parent=32 // loop_header
            %s1348 = sphi 0, %s1352
            %p1349 = scmp.ge.s32.totalorder %s1348, 1
            %s1353 = sphi [#allocation2], [#allocation2]
            %s1354 = sphi %s4, %s4
          $region36: #{layer_norm.1} parent=32 // loop_header_branch
            %1351 = sbr.rel (%p1349) target = $region40
          $region37: #{layer_norm.1} parent=32 // loop_body
            %v1355 = vld [vmem:[%s1353] sm:%s1346]
            %1356 = vst [vmem:[%s1354] sm:%s1346] %v1355
          $region38: #{layer_norm.1} parent=32 // loop_footer
            %s1352 = sadd.s32 1, %s1348
          $region39: #{layer_norm.1} parent=32 // loop_footer_branch
            %1347 = sbr.rel target = $region35
          $region40: #{layer_norm.1} parent=32 // loop_exit
            _
        $region33: #{layer_norm.1} parent=24 // pred_fallthru
          _
      $region25: #{layer_norm.1} parent=20 // pred_fallthru
        _
      %1371 = vnop
    $region21: #{layer_norm.1} parent=1 // pred_fallthru
      _
    // Predicated region
    $region52: #{layer_norm.1} parent=1 // pred_check
      _
    $region53: #{layer_norm.1} parent=1 // pred_check_branch
      %1373 = sbr.rel (0) target = $region55
    $region54: #{layer_norm.1} parent=1 // pred_region
      _
    $region55: #{layer_norm.1} parent=1 // pred_fallthru
      _

</llo_original>
